<compile_context>
chip_gen: v6e
topology: v6e:2x2x1
jax: 0.10.0
libtpu: 0.0.40
codegen_flags: <defaults>
</compile_context>

<pallas_src>
import jax
import jax.numpy as jnp
from jax.experimental import pallas as pl
from jax.experimental.pallas import tpu as pltpu


def _round_up(x, m):
    return (x + m - 1) // m * m


def _conv_stats_kernel(slab_ref, w_ref, conv_ref, stats_ref):
    """Channel-major im2col matmul + per-tile per-channel sum / sumsq.

    slab_ref : (1, Kc_pad, TILE_S) bf16  im2col tile (contraction on sublanes)
    w_ref    : (C_pad, Kc_pad)     bf16  reshaped conv weights (resident)
    conv_ref : (1, Cout, TILE_S)   bf16  compact channel-major conv tile
    stats_ref: (1, 1, C_pad, 2)    f32   lane 0: sum, lane 1: sumsq
    """
    acc = jnp.dot(w_ref[...], slab_ref[0],
                  preferred_element_type=jnp.float32)       # (C_pad, TILE_S) f32
    # BN batch statistics from the f32 accumulator (before the bf16 round).
    stats_ref[0, 0, :, 0:1] = jnp.sum(acc, axis=1, keepdims=True)
    stats_ref[0, 0, :, 1:2] = jnp.sum(acc * acc, axis=1, keepdims=True)
    # Compact (Cout channels only), lane-dense bf16 writeback.
    cout = conv_ref.shape[1]
    conv_ref[0] = acc[:cout, :].astype(conv_ref.dtype)


def _bn_relu_kernel(conv_ref, scale_ref, shift_ref, out_ref):
    """y = max(conv * scale + shift, 0); channel-major, lane-dense in and out.

    conv_ref : (1, Cout, TILE_S) bf16
    scale_ref: (Cout, 1) f32     shift_ref: (Cout, 1) f32
    out_ref  : (1, Cout, TILE_S) f32
    """
    y = conv_ref[0].astype(jnp.float32) * scale_ref[...] + shift_ref[...]
    out_ref[0] = jnp.maximum(y, 0.0)


def skip_block_forward(x_nchw, w_oihw, b, gamma, beta, *, eps=1e-5, tile_s=2048):
    """SkipBlock.forward. x_nchw: (N, Cin, H, W) f32 -> (N, Cout, H, W) f32."""
    del b  # Conv bias is a mathematical no-op under train-mode BatchNorm.
    N, Cin, H, W = x_nchw.shape
    Cout, Cin_w, K, _ = w_oihw.shape
    assert Cin_w == Cin
    p = (K - 1) // 2

    S = H * W
    Kc = K * K * Cin
    C_pad = _round_up(Cout, 8)           # sublane-friendly, NOT 128
    Kc_pad = _round_up(Kc, 16)           # bf16 sublane packing; NOT 128

    # Spatial tiling: multiple of 128 lanes, balanced so padding stays small.
    n_s = max(1, -(-S // tile_s))                    # cdiv(S, tile_s)
    tile_s_eff = _round_up(-(-S // n_s), 128)        # cdiv(S, n_s) -> x128
    S_pad = tile_s_eff * n_s
    grid = (N, n_s)                                  # >= 2 steps for 2 TCs

    # ---- XLA-side glue, all in bf16: pad + channel-major im2col; no layout
    # transposes of the activation tensor.
    x_bf = x_nchw.astype(jnp.bfloat16)
    x_p = jnp.pad(x_bf, ((0, 0), (0, 0), (p, p), (p, p)))
    patches = [x_p[:, :, kh:kh + H, kw:kw + W].reshape(N, Cin, S)
               for kh in range(K) for kw in range(K)]
    slab = jnp.concatenate(patches, axis=1)                      # (N, Kc, S)
    slab = jnp.pad(slab, ((0, 0), (0, Kc_pad - Kc), (0, S_pad - S)))

    # (Cout, Cin, K, K) -> (Cout, K, K, Cin) -> (Cout, Kc): matches the
    # (kh, kw, cin) ordering of the im2col concat above.
    w_t = jnp.transpose(w_oihw, (0, 2, 3, 1)).reshape(Cout, Kc)
    w_t = jnp.pad(w_t.astype(jnp.float32),
                  ((0, C_pad - Cout), (0, Kc_pad - Kc))).astype(jnp.bfloat16)

    # ---- Pass 1: conv matmul + per-tile BN sum / sumsq (MXU + XLU).
    conv, stats = pl.pallas_call(
        _conv_stats_kernel,
        out_shape=(jax.ShapeDtypeStruct((N, Cout, S_pad), jnp.bfloat16),
                   jax.ShapeDtypeStruct((N, n_s, C_pad, 2), jnp.float32)),
        grid=grid,
        in_specs=[pl.BlockSpec((1, Kc_pad, tile_s_eff), lambda n, s: (n, 0, s)),
                  pl.BlockSpec((C_pad, Kc_pad), lambda n, s: (0, 0))],
        out_specs=(pl.BlockSpec((1, Cout, tile_s_eff), lambda n, s: (n, 0, s)),
                   pl.BlockSpec((1, 1, C_pad, 2), lambda n, s: (n, s, 0, 0))),
        compiler_params=pltpu.CompilerParams(
            dimension_semantics=("parallel", "parallel")),
    )(slab, w_t)

    # ---- Tiny cross-tile reduction + per-channel scale/shift (C-sized work).
    total = jnp.sum(stats, axis=(0, 1))[:Cout]        # (Cout, 2)
    count = float(N * S)
    mean = total[:, 0] / count
    var = jnp.maximum(total[:, 1] / count - mean * mean, 0.0)
    inv_std = jax.lax.rsqrt(var + eps)
    g32 = gamma.astype(jnp.float32)
    scale = (g32 * inv_std).reshape(Cout, 1)
    shift = (beta.astype(jnp.float32) - mean * g32 * inv_std).reshape(Cout, 1)

    # ---- Pass 2: normalize + ReLU; compact, lane-dense, already NCHW-flat.
    out = pl.pallas_call(
        _bn_relu_kernel,
        out_shape=jax.ShapeDtypeStruct((N, Cout, S_pad), jnp.float32),
        grid=grid,
        in_specs=[pl.BlockSpec((1, Cout, tile_s_eff), lambda n, s: (n, 0, s)),
                  pl.BlockSpec((Cout, 1), lambda n, s: (0, 0)),
                  pl.BlockSpec((Cout, 1), lambda n, s: (0, 0))],
        out_specs=pl.BlockSpec((1, Cout, tile_s_eff), lambda n, s: (n, 0, s)),
        compiler_params=pltpu.CompilerParams(
            dimension_semantics=("parallel", "parallel")),
    )(conv, scale, shift)

    if S_pad != S:
        out = out[:, :, :S]
    return out.reshape(N, Cout, H, W)                 # reshape only, no transpose


def _reference(x_nchw, w_oihw, b, gamma, beta, eps=1e-5):
    """Pure-JAX f32 reference of Conv2d + train-mode BatchNorm2d + ReLU."""
    K = w_oihw.shape[-1]
    p = (K - 1) // 2
    conv = jax.lax.conv_general_dilated(
        x_nchw, w_oihw, window_strides=(1, 1), padding=((p, p), (p, p)),
        dimension_numbers=('NCHW', 'OIHW', 'NCHW'))
    conv = conv + b.reshape(1, -1, 1, 1)
    mean = jnp.mean(conv, axis=(0, 2, 3), keepdims=True)
    var = jnp.mean((conv - mean) ** 2, axis=(0, 2, 3), keepdims=True)
    y = (conv - mean) * jax.lax.rsqrt(var + eps)
    y = y * gamma.reshape(1, -1, 1, 1) + beta.reshape(1, -1, 1, 1)
    return jnp.maximum(y, 0.0)


if __name__ == "__main__":
    # SkipBlock(in_channels=4, out_channels=8, kernel_size=3)
    N, Cin, H, W = 2, 4, 16, 16
    Cout, K = 8, 3

    key = jax.random.PRNGKey(0)
    kx, kw, kb, kg, kbt = jax.random.split(key, 5)

    x = jax.random.normal(kx, (N, Cin, H, W), dtype=jnp.float32)

    fan_in = Cin * K * K
    bound = 1.0 / (fan_in ** 0.5)
    w = jax.random.uniform(kw, (Cout, Cin, K, K), jnp.float32, -bound, bound)
    b = jax.random.uniform(kb, (Cout,), jnp.float32, -bound, bound)
    gamma = jnp.ones((Cout,), jnp.float32) + 0.1 * jax.random.normal(kg, (Cout,))
    beta = 0.1 * jax.random.normal(kbt, (Cout,), dtype=jnp.float32)

    out = skip_block_forward(x, w, b, gamma, beta)
    out = jax.block_until_ready(out)

    ref = _reference(x, w, b, gamma, beta)
    assert out.shape == (N, Cout, H, W)
    err = jnp.max(jnp.abs(out - ref))
    # bf16 matmul operands + bf16 conv intermediate (f32 MXU accumulation and
    # f32 BN statistics) -> relaxed tolerance vs the f32 reference.
    assert err < 5e-2, f"max abs err {err}"

    print("KERNEL_OK")
</pallas_src>

<mosaic_0001>
module attributes {stable_mosaic.version = 11 : i64} {
  func.func @_conv_stats_kernel(%arg0: i32, %arg1: i32, %arg2: memref<1x48x256xbf16, #tpu.memory_space<vmem>>, %arg3: memref<8x48xbf16, #tpu.memory_space<vmem>>, %arg4: memref<1x8x256xbf16, #tpu.memory_space<vmem>>, %arg5: memref<1x1x8x2xf32, #tpu.memory_space<vmem>>) attributes {dimension_semantics = [#tpu.dimension_semantics<parallel>, #tpu.dimension_semantics<parallel>], iteration_bounds = array<i64: 2, 1>, scalar_prefetch = 0 : i64, scratch_operands = 0 : i64, tpu.core_type = #tpu.core_type<tc>, window_params = [{transform_indices = @transform_0, window_bounds = array<i64: 1, 48, 256>}, {pipeline_mode = #tpu.pipeline_mode<synchronous>, transform_indices = @transform_1, window_bounds = array<i64: 8, 48>}, {transform_indices = @transform_2, window_bounds = array<i64: 1, 8, 256>}, {transform_indices = @transform_3, window_bounds = array<i64: 1, 1, 8, 2>}]} {
    %c0 = arith.constant 0 : index
    %c0_0 = arith.constant 0 : index
    %0 = vector.load %arg3[%c0, %c0_0] : memref<8x48xbf16, #tpu.memory_space<vmem>>, vector<8x48xbf16>
    %c0_1 = arith.constant 0 : index
    %c0_2 = arith.constant 0 : index
    %c0_3 = arith.constant 0 : index
    %1 = vector.load %arg2[%c0_1, %c0_2, %c0_3] : memref<1x48x256xbf16, #tpu.memory_space<vmem>>, vector<1x48x256xbf16>
    %2 = vector.shape_cast %1 : vector<1x48x256xbf16> to vector<48x256xbf16>
    %cst = arith.constant dense<0.000000e+00> : vector<8x256xf32>
    %3 = tpu.matmul %0, %2, %cst {dimension_numbers = #tpu.dot_dimension_numbers<[1], [0], [0], [1], [0, 0, 1, 1], [], []>} : vector<8x48xbf16>, vector<48x256xbf16>, vector<8x256xf32> -> vector<8x256xf32>
    %cst_4 = arith.constant dense<0.000000e+00> : vector<8xf32>
    %4 = vector.multi_reduction <add>, %3, %cst_4 [1] : vector<8x256xf32> to vector<8xf32>
    %5 = vector.shape_cast %4 : vector<8xf32> to vector<8x1xf32>
    %c0_5 = arith.constant 0 : index
    %c0_6 = arith.constant 0 : index
    %c0_7 = arith.constant 0 : index
    %c0_8 = arith.constant 0 : index
    %6 = vector.load %arg5[%c0_5, %c0_6, %c0_7, %c0_8] : memref<1x1x8x2xf32, #tpu.memory_space<vmem>>, vector<1x1x8x1xf32>
    %7 = vector.shape_cast %6 : vector<1x1x8x1xf32> to vector<8x1xf32>
    %8 = vector.shape_cast %5 : vector<8x1xf32> to vector<1x1x8x1xf32>
    tpu.vector_store %arg5[%c0_5, %c0_6, %c0_7, %c0_8], %8 {strides = array<i32>} : memref<1x1x8x2xf32, #tpu.memory_space<vmem>>, vector<1x1x8x1xf32>,
    %9 = arith.mulf %3, %3 : vector<8x256xf32>
    %cst_9 = arith.constant dense<0.000000e+00> : vector<8xf32>
    %10 = vector.multi_reduction <add>, %9, %cst_9 [1] : vector<8x256xf32> to vector<8xf32>
    %11 = vector.shape_cast %10 : vector<8xf32> to vector<8x1xf32>
    %c0_10 = arith.constant 0 : index
    %c0_11 = arith.constant 0 : index
    %c0_12 = arith.constant 0 : index
    %c1 = arith.constant 1 : index
    %12 = vector.load %arg5[%c0_10, %c0_11, %c0_12, %c1] : memref<1x1x8x2xf32, #tpu.memory_space<vmem>>, vector<1x1x8x1xf32>
    %13 = vector.shape_cast %12 : vector<1x1x8x1xf32> to vector<8x1xf32>
    %14 = vector.shape_cast %11 : vector<8x1xf32> to vector<1x1x8x1xf32>
    tpu.vector_store %arg5[%c0_10, %c0_11, %c0_12, %c1], %14 {strides = array<i32>} : memref<1x1x8x2xf32, #tpu.memory_space<vmem>>, vector<1x1x8x1xf32>,
    %15 = arith.truncf %3 : vector<8x256xf32> to vector<8x256xbf16>
    %c0_13 = arith.constant 0 : index
    %c0_14 = arith.constant 0 : index
    %c0_15 = arith.constant 0 : index
    %16 = vector.load %arg4[%c0_13, %c0_14, %c0_15] : memref<1x8x256xbf16, #tpu.memory_space<vmem>>, vector<1x8x256xbf16>
    %17 = vector.shape_cast %16 : vector<1x8x256xbf16> to vector<8x256xbf16>
    %18 = vector.shape_cast %15 : vector<8x256xbf16> to vector<1x8x256xbf16>
    tpu.vector_store %arg4[%c0_13, %c0_14, %c0_15], %18 {strides = array<i32>} : memref<1x8x256xbf16, #tpu.memory_space<vmem>>, vector<1x8x256xbf16>,
    return
  }
  func.func @transform_0(%arg0: i32, %arg1: i32) -> (i32, i32, i32) {
    %c0_i32 = arith.constant 0 : i32
    %c0_i32_0 = arith.constant 0 : i32
    return %arg0, %c0_i32, %arg1 : i32, i32, i32
  }
  func.func @transform_1(%arg0: i32, %arg1: i32) -> (i32, i32) {
    %c0_i32 = arith.constant 0 : i32
    %c0_i32_0 = arith.constant 0 : i32
    %c0_i32_1 = arith.constant 0 : i32
    return %c0_i32, %c0_i32_0 : i32, i32
  }
  func.func @transform_2(%arg0: i32, %arg1: i32) -> (i32, i32, i32) {
    %c0_i32 = arith.constant 0 : i32
    %c0_i32_0 = arith.constant 0 : i32
    return %arg0, %c0_i32, %arg1 : i32, i32, i32
  }
  func.func @transform_3(%arg0: i32, %arg1: i32) -> (i32, i32, i32, i32) {
    %c0_i32 = arith.constant 0 : i32
    %c0_i32_0 = arith.constant 0 : i32
    %c0_i32_1 = arith.constant 0 : i32
    return %arg0, %arg1, %c0_i32, %c0_i32_0 : i32, i32, i32, i32
  }
}

</mosaic_0001>

<llo_original>
// kernel: tpu_custom_call.1
$region0: #{tpu_custom_call.1}
  #allocation0 [shape = 'u32[]', space=smem, size = 0x4, offset = 0x4, fixed_abs, tag = 'smem constant byte address 0x4 - core index']
  #allocation1 [shape = 'u32[144,128]{1,0:T(1,128)}', space=vmem, size = 0x12000, scoped, tag = 'internal scratch']
  %s0 = inlined_call_operand.hbm [shape: bf16[2,48,256], index: 0, kind: input, shape index: {}]
  %s1 = inlined_call_operand.hbm [shape: bf16[8,48], index: 1, kind: input, shape index: {}]
  %s2 = inlined_call_operand.hbm [shape: bf16[2,8,256], index: 2, kind: output, shape index: {0}]
  %s3 = inlined_call_operand.vmem [shape: f32[2,1,8,2], index: 3, kind: output, shape index: {1}]
  %4 = xla_tuple %s2, %s3
  %s5 = sld [smem:[#allocation0]]
  $region57: #{tpu_custom_call.1} parent=0
    _
  %s7 = ssub.s32 1, %s5
  %s8 = scalar_select 0, %s7, %s5
  $region1: #{tpu_custom_call.1} parent=0
    #allocation2 [shape = 'u8[49152]{0}', space=vmem, size = 0xc000, scoped, tag = 'input window, operand 0']
    #allocation3 [shape = 's32[2]{0}', space=sflag, size = 0x8, scoped, tag = 'scoped memory for tpu_custom_call.1']
    #allocation4 [shape = 's32[2]{0}', space=sflag, size = 0x8, scoped, tag = 'scoped memory for tpu_custom_call.1']
    #allocation5 [shape = 'u8[2048]{0}', space=vmem, size = 0x800, scoped, tag = 'input window, operand 1, single buffered']
    #allocation6 [shape = 's32[1]{0}', space=sflag, size = 0x4, scoped, tag = 'scoped memory for tpu_custom_call.1']
    #allocation7 [shape = 'u8[8192]{0}', space=vmem, size = 0x2000, scoped, tag = 'output window, operand 0']
    %9 = vsyncpa [#allocation3], 0
    %s10 = scalar_lea.sflag [#allocation3], 1
    %11 = vsyncpa %s10, 0
    %12 = vsyncpa [#allocation6], 0
    %13 = vsyncpa [#allocation4], 0
    %s14 = scalar_lea.sflag [#allocation4], 1
    %15 = vsyncpa %s14, 0
    loop: start=0, step=1, limit=4
    $region2: #{tpu_custom_call.1} parent=1 // loop_pre_header
      _
    $region3: #{tpu_custom_call.1} parent=1 // loop_header
      %s17 = sphi 0, %s21
      %p18 = scmp.ge.s32.totalorder %s17, 4
      %s24 = sphi 0, %s36
      %s25 = sphi 0, %s32
      %s26 = sphi 0, %s24
      %s27 = sphi 0, %s25
      %s28 = sphi 0, %s26
      %s29 = sphi 0, %s27
      %s41 = sphi 0, %s43
      %s44 = sphi 0, %s41
      %s45 = sphi 0, %s44
      %s61 = sphi 0, %s45
      %s65 = sphi 0, %s65
      %s67 = sphi 0, %s65
      %s68 = sphi 0, %s67
      %s82 = sphi 0, %s68
      %s90 = sphi 0, %s92
      %s93 = sphi 0, %s90
      %s94 = sphi 0, %s93
      %s110 = sphi 0, %s94
      %s118 = sphi 0, %s120
      %s121 = sphi 0, %s118
      %s122 = sphi 0, %s121
      %s138 = sphi 0, %s122
    $region4: #{tpu_custom_call.1} parent=1 // loop_header_branch
      %20 = sbr.rel (%p18) target = $region8
    $region5: #{tpu_custom_call.1} parent=1 // loop_body
      %s22 = ssub.s32 %s17, 1
      %s23 = ssub.s32 %s17, 2
      %s30 = sadd.s32 1, %s25
      %p31 = scmp.ge.s32.totalorder %s30, 1
      %s32 = scalar_select %p31, 0, %s30
      %s33 = sadd.s32 1, %s24
      %s34 = scalar_select %p31, %s33, %s24
      %p35 = scmp.ge.s32.totalorder %s34, 2
      %s36 = scalar_select %p35, 0, %s34
      %s37 = ssub.s32 %s24, %s36
      %s38 = ssub.s32 %s25, %s32
      %s39 = sor.u32 %s37, %s38
      %p40 = scmp.eq.s32.totalorder %s39, 0
      %s42 = sadd.s32 %s41, 1
      %s43 = scalar_select %p40, %s41, %s42
      %p46 = pneg %p40
      %p47 = scmp.eq.s32.totalorder %s17, 1
      %p48 = por %p46, %p47
      %p49 = scmp.ne.s32.totalorder %s41, %s44
      %p50 = scmp.eq.s32.totalorder %s17, 0
      %p51 = por %p49, %p50
      %p52 = scmp.ne.s32.totalorder %s41, %s44
      %p53 = scmp.eq.s32.totalorder %s22, 1
      %p54 = por %p52, %p53
      %p55 = scmp.ne.s32.totalorder %s44, %s45
      %p56 = scmp.eq.s32.totalorder %s22, 0
      %p57 = por %p55, %p56
      %p58 = scmp.ne.s32.totalorder %s44, %s45
      %p59 = scmp.eq.s32.totalorder %s23, 1
      %p60 = por %p58, %p59
      %p62 = scmp.ne.s32.totalorder %s45, %s61
      %p63 = scmp.eq.s32.totalorder %s23, 0
      %p64 = por %p62, %p63
      %s66 = sadd.s32 %s65, 1
      %p69 = scmp.eq.s32.totalorder %s17, 1
      %p70 = scmp.ne.s32.totalorder %s65, %s67
      %p71 = scmp.eq.s32.totalorder %s17, 0
      %p72 = por %p70, %p71
      %p73 = scmp.ne.s32.totalorder %s65, %s67
      %p74 = scmp.eq.s32.totalorder %s22, 1
      %p75 = por %p73, %p74
      %p76 = scmp.ne.s32.totalorder %s67, %s68
      %p77 = scmp.eq.s32.totalorder %s22, 0
      %p78 = por %p76, %p77
      %p79 = scmp.ne.s32.totalorder %s67, %s68
      %p80 = scmp.eq.s32.totalorder %s23, 1
      %p81 = por %p79, %p80
      %p83 = scmp.ne.s32.totalorder %s68, %s82
      %p84 = scmp.eq.s32.totalorder %s23, 0
      %p85 = por %p83, %p84
      %s86 = ssub.s32 %s24, %s36
      %s87 = ssub.s32 %s25, %s32
      %s88 = sor.u32 %s86, %s87
      %p89 = scmp.eq.s32.totalorder %s88, 0
      %s91 = sadd.s32 %s90, 1
      %s92 = scalar_select %p89, %s90, %s91
      %p95 = pneg %p89
      %p96 = scmp.eq.s32.totalorder %s17, 1
      %p97 = por %p95, %p96
      %p98 = scmp.ne.s32.totalorder %s90, %s93
      %p99 = scmp.eq.s32.totalorder %s17, 0
      %p100 = por %p98, %p99
      %p101 = scmp.ne.s32.totalorder %s90, %s93
      %p102 = scmp.eq.s32.totalorder %s22, 1
      %p103 = por %p101, %p102
      %p104 = scmp.ne.s32.totalorder %s93, %s94
      %p105 = scmp.eq.s32.totalorder %s22, 0
      %p106 = por %p104, %p105
      %p107 = scmp.ne.s32.totalorder %s93, %s94
      %p108 = scmp.eq.s32.totalorder %s23, 1
      %p109 = por %p107, %p108
      %p111 = scmp.ne.s32.totalorder %s94, %s110
      %p112 = scmp.eq.s32.totalorder %s23, 0
      %p113 = por %p111, %p112
      %s114 = ssub.s32 %s24, %s36
      %s115 = ssub.s32 %s25, %s32
      %s116 = sor.u32 %s114, %s115
      %p117 = scmp.eq.s32.totalorder %s116, 0
      %s119 = sadd.s32 %s118, 1
      %s120 = scalar_select %p117, %s118, %s119
      %p123 = pneg %p117
      %p124 = scmp.eq.s32.totalorder %s17, 1
      %p125 = por %p123, %p124
      %p126 = scmp.ne.s32.totalorder %s118, %s121
      %p127 = scmp.eq.s32.totalorder %s17, 0
      %p128 = por %p126, %p127
      %p129 = scmp.ne.s32.totalorder %s118, %s121
      %p130 = scmp.eq.s32.totalorder %s22, 1
      %p131 = por %p129, %p130
      %p132 = scmp.ne.s32.totalorder %s121, %s122
      %p133 = scmp.eq.s32.totalorder %s22, 0
      %p134 = por %p132, %p133
      %p135 = scmp.ne.s32.totalorder %s121, %s122
      %p136 = scmp.eq.s32.totalorder %s23, 1
      %p137 = por %p135, %p136
      %p139 = scmp.ne.s32.totalorder %s122, %s138
      %p140 = scmp.eq.s32.totalorder %s23, 0
      %p141 = por %p139, %p140
      %p142 = scmp.le.s32.totalorder 1, %s17
      %p143 = scmp.lt.s32.totalorder %s17, 3
      %p144 = pnand %p142, %p143
      %p145 = pneg %p144
      // Predicated region
      $region9: #{tpu_custom_call.1} parent=5 // pred_check
        _
      $region10: #{tpu_custom_call.1} parent=5 // pred_check_branch
        %147 = sbr.rel (%p144) target = $region12
      $region11: #{tpu_custom_call.1} parent=5 // pred_region
        %s148 = ssub.s32 %s17, 1
        // Predicated region
        $region13: #{tpu_custom_call.1} parent=11 // pred_check
          %p149 = pneg %p78
        $region14: #{tpu_custom_call.1} parent=11 // pred_check_branch
          %151 = sbr.rel (%p149) target = $region16
        $region15: #{tpu_custom_call.1} parent=11 // pred_region
          %s153 = ssub.s32 64, 64
          %154 = vsyncadd [#allocation6], %s153
          %s156 = sshll.u32 [#allocation5], 4
          %s157 = int_to_ptr.vmem [resolvable:$true] %s156
          %159 = dma.hbm_to_vmem [thread:$0]  %s1, 64, %s157, [#allocation6]
        $region16: #{tpu_custom_call.1} parent=11 // pred_fallthru
          _
      $region12: #{tpu_custom_call.1} parent=5 // pred_fallthru
        _
      %p160 = scmp.lt.s32.totalorder %s17, 2
      // Predicated region
      $region17: #{tpu_custom_call.1} parent=5 // pred_check
        %p161 = pneg %p160
      $region18: #{tpu_custom_call.1} parent=5 // pred_check_branch
        %163 = sbr.rel (%p161) target = $region20
      $region19: #{tpu_custom_call.1} parent=5 // pred_region
        // Predicated region
        $region21: #{tpu_custom_call.1} parent=19 // pred_check
          %p164 = pneg %p51
        $region22: #{tpu_custom_call.1} parent=19 // pred_check_branch
          %166 = sbr.rel (%p164) target = $region24
        $region23: #{tpu_custom_call.1} parent=19 // pred_region
          %s167 = sand.u32 %s41, 1
          %s168 = scalar_lea.sflag [#allocation3], %s167
          %s169 = sand.u32 %s41, 1
          %s170 = smul.addr %s169, 48
          %s171 = scalar_lea.vmem [#allocation2], %s170
          %s172 = smul.u32 2, %s25
          %s174 = ssub.s32 768, 768
          %175 = vsyncadd %s168, %s174
          %s176 = smul.addr %s24, 12
          %s177 = sadd.s32 %s172, %s176
          %s178 = smul.addr %s177, 64
          %s179 = scalar_lea.hbm %s0, %s178
          %s180 = sshll.u32 %s171, 4
          %s181 = int_to_ptr.vmem [resolvable:$true] %s180
          %186 = dma.hbm_to_vmem [thread:$0]  %s179, 768, %s181, %s168, 128, 128, 8
        $region24: #{tpu_custom_call.1} parent=19 // pred_fallthru
          _
      $region20: #{tpu_custom_call.1} parent=5 // pred_fallthru
        _
      %p187 = scmp.le.s32.totalorder 1, %s17
      %p188 = scmp.lt.s32.totalorder %s17, 3
      %p189 = pnand %p187, %p188
      %p190 = pneg %p189
      // Predicated region
      $region25: #{tpu_custom_call.1} parent=5 // pred_check
        _
      $region26: #{tpu_custom_call.1} parent=5 // pred_check_branch
        %192 = sbr.rel (%p189) target = $region28
      $region27: #{tpu_custom_call.1} parent=5 // pred_region
        %s193 = ssub.s32 %s17, 1
        %s194 = sand.u32 %s44, 1
        %s195 = scalar_lea.sflag [#allocation3], %s194
        %s196 = sand.u32 %s44, 1
        %s197 = smul.addr %s196, 48
        %s198 = scalar_lea.vmem [#allocation2], %s197
        // Predicated region
        $region29: #{tpu_custom_call.1} parent=27 // pred_check
          %p199 = pneg %p57
        $region30: #{tpu_custom_call.1} parent=27 // pred_check_branch
          %201 = sbr.rel (%p199) target = $region32
        $region31: #{tpu_custom_call.1} parent=27 // pred_region
          %202 = dma.done %s195, 768
        $region32: #{tpu_custom_call.1} parent=27 // pred_fallthru
          _
        // Predicated region
        $region33: #{tpu_custom_call.1} parent=27 // pred_check
          %p203 = pneg %p78
        $region34: #{tpu_custom_call.1} parent=27 // pred_check_branch
          %205 = sbr.rel (%p203) target = $region36
        $region35: #{tpu_custom_call.1} parent=27 // pred_region
          %206 = dma.done [#allocation6], 64
        $region36: #{tpu_custom_call.1} parent=27 // pred_fallthru
          _
        %s207 = sand.u32 %s44, 1
        %s208 = scalar_lea.sflag [#allocation3], %s207
        %s209 = sand.u32 %s44, 1
        %s210 = smul.addr %s209, 48
        %s211 = scalar_lea.vmem [#allocation2], %s210
        %p212 = pneg %p57
        %p213 = pneg %p54
        %p214 = pneg %p78
        %p215 = pneg %p75
        %p216 = pneg %p106
        %p217 = pneg %p103
        %s218 = sand.u32 %s93, 1
        %s219 = scalar_lea.sflag [#allocation4], %s218
        %s220 = sand.u32 %s93, 1
        %s221 = smul.addr %s220, 8
        %s222 = scalar_lea.vmem [#allocation7], %s221
        %p223 = pneg %p134
        %p224 = pneg %p131
        %p225 = scmp.lt.s32.totalorder %s26, 1
        %s226 = scalar_select %p225, %s26, 1
        %p227 = scmp.lt.s32.totalorder %s27, 0
        %s228 = scalar_select %p227, %s27, 0
        %s229 = sadd.s32 %s228, %s226
        %s230 = smul.addr %s229, 8
        %s231 = scalar_lea.vmem %s3, %s230
        %s232 = smul.u32 2, %s27
        %s233 = smul.u32 2, %s27
        %p234 = scmp.lt.s32.totalorder %s26, 1
        %s235 = scalar_select %p234, %s26, 1
        %p236 = scmp.lt.s32.totalorder %s27, 0
        %s237 = scalar_select %p236, %s27, 0
        %s238 = sadd.s32 %s237, %s235
        %s239 = smul.addr %s238, 8
        %s240 = scalar_lea.vmem %s3, %s239
        %v242 = vld [vmem:[#allocation5] sm:$0xf]
        %v243 = vld [vmem:[%s198] sm:$0xff]
        %v244 = vld [vmem:[%s198 + $0x8] sm:$0xff]
        %v245 = vld [vmem:[%s198 + $0x10] sm:$0xff]
        %v246 = vld [vmem:[%s198 + $0x18] sm:$0xff]
        %v247 = vld [vmem:[%s198 + $0x20] sm:$0xff]
        %v248 = vld [vmem:[%s198 + $0x28] sm:$0xff]
        %v255 = vunpack.c.l.b16 %v243
        %v256 = vunpack.c.h.b16 %v243
        %v257 = vunpack.c.l.b16 %v244
        %v258 = vunpack.c.h.b16 %v244
        %v259 = vunpack.c.l.b16 %v245
        %v260 = vunpack.c.h.b16 %v245
        %v261 = vunpack.c.l.b16 %v246
        %v262 = vunpack.c.h.b16 %v246
        %v263 = vunpack.c.l.b16 %v247
        %v264 = vunpack.c.h.b16 %v247
        %v265 = vunpack.c.l.b16 %v248
        %v266 = vunpack.c.h.b16 %v248
        %v267 = vpack.c.b16 %v257, %v255
        %v268 = vpack.c.b16 %v258, %v256
        %v269 = vpack.c.b16 %v261, %v259
        %v270 = vpack.c.b16 %v262, %v260
        %v271 = vpack.c.b16 %v265, %v263
        %v272 = vpack.c.b16 %v266, %v264
        %vm279 = vcmask 392192
        %v281 = vsel %vm279, %v242, 0
        %283 = vmatprep.subr.bf16.mxu0 0
        %284 = vmatpush1.bf16.msra.mxu0 0
        %285 = vmatprep.subr.bf16.mxu0 0
        %286 = vmatpush1.bf16.msra.mxu0 0
        %287 = vmatprep.subr.bf16.mxu0 0
        %288 = vmatpush1.bf16.msra.mxu0 0
        %289 = vmatprep.subr.bf16.mxu0 0
        %290 = vmatpush1.bf16.msra.mxu0 0
        %291 = vmatprep.subr.bf16.mxu0 0
        %292 = vmatpush1.bf16.msra.mxu0 0
        %293 = vmatprep.subr.bf16.mxu0 %v272
        %294 = vmatpush1.bf16.msra.mxu0 %v271
        %295 = vmatprep.subr.bf16.mxu0 %v270
        %296 = vmatpush1.bf16.msra.mxu0 %v269
        %297 = vmatprep.subr.bf16.mxu0 %v268
        %298 = vmatpush1.bf16.msra.mxu0 %v267
        %299 = vmatprep.subr.bf16.mxu0 0
        %300 = vmatpush2.bf16.msra.mxu0 0
        %301 = vmatprep.subr.bf16.mxu0 0
        %302 = vmatpush2.bf16.msra.mxu0 0
        %303 = vmatprep.subr.bf16.mxu0 0
        %304 = vmatpush2.bf16.msra.mxu0 0
        %305 = vmatprep.subr.bf16.mxu0 0
        %306 = vmatpush2.bf16.msra.mxu0 0
        %307 = vmatprep.subr.bf16.mxu0 0
        %308 = vmatpush2.bf16.msra.mxu0 0
        %309 = vmatprep.subr.bf16.mxu0 0
        %310 = vmatpush2.bf16.msra.mxu0 0
        %311 = vmatprep.subr.bf16.mxu0 0
        %312 = vmatpush2.bf16.msra.mxu0 0
        %313 = vmatprep.subr.bf16.mxu0 0
        %314 = vmatpush2.bf16.msra.mxu0 0
        %315 = vmatprep.mubr.bf16.mxu0 0
        %316 = vmatmul.mubr.bf16.gmra.mxu0 %v281
        %v317 = vpop.f32.mrf.mxu0
        %v318 = vadd.f32 0.0, %v317
        %v319 = vpop.f32.mrf.mxu0
        %v320 = vadd.f32 0.0, %v319
        %v321 = vpop.f32.mrf.mxu0
        %v322 = vpop.f32.mrf.mxu0
        %323 = vdwg.mxu0
        %v324 = vadd.f32 %v318, %v320
        %325 = vadd.xlane.f32.xlu0 %v324
        %v326 = vpop.xlane.xlu0 %325
        %vm327 = vcmask 7168
        %328 = vst.msk [vmem:[%s240] sm:$0xff] %vm327, %v326
        %v329 = vmul.f32 %v318, %v318
        %v330 = vmul.f32 %v320, %v320
        %v331 = vadd.f32 %v329, %v330
        %332 = vadd.xlane.f32.xlu0 %v331
        %v333 = vpop.xlane.xlu0 %332
        %vm334 = vcmask 15368
        %335 = vst.msk [vmem:[%s240] sm:$0xff] %vm334, %v333
        %v336 = vpack.c.bf16 %v318, %v318
        %v337 = vpack.c.bf16 %v320, %v320
        %v340 = vunpack.c.l.b16 %v336
        %v341 = vunpack.c.l.b16 %v337
        %v342 = vpack.c.b16 %v341, %v340
        %344 = vst [vmem:[%s222] sm:$0xff] %v342
        %s345 = sand.u32 %s93, 1
        %s346 = scalar_lea.sflag [#allocation4], %s345
        %s347 = sand.u32 %s93, 1
        %s348 = smul.addr %s347, 8
        %s349 = scalar_lea.vmem [#allocation7], %s348
        %p350 = scmp.lt.s32.totalorder %s26, 1
        %s351 = scalar_select %p350, %s26, 1
        %p352 = scmp.lt.s32.totalorder %s27, 0
        %s353 = scalar_select %p352, %s27, 0
        %s354 = sadd.s32 %s353, %s351
        %s355 = smul.addr %s354, 8
        %s356 = scalar_lea.vmem %s3, %s355
        // Predicated region
        $region37: #{tpu_custom_call.1} parent=27 // pred_check
          %p357 = pneg %p103
        $region38: #{tpu_custom_call.1} parent=27 // pred_check_branch
          %359 = sbr.rel (%p357) target = $region40
        $region39: #{tpu_custom_call.1} parent=27 // pred_region
          %s360 = smul.u32 2, %s27
          %s362 = ssub.s32 128, 128
          %363 = vsyncadd %s346, %s362
          %s364 = smul.addr %s26, 2
          %s365 = sadd.s32 %s360, %s364
          %s366 = smul.addr %s365, 64
          %s367 = scalar_lea.hbm %s2, %s366
          %s369 = sshll.u32 %s349, 4
          %s370 = int_to_ptr.vmem [resolvable:$true] %s369
          %372 = dma.vmem_to_hbm [thread:$0]  %s370, 128, %s367, %s346
        $region40: #{tpu_custom_call.1} parent=27 // pred_fallthru
          _
        // Predicated region
        $region41: #{tpu_custom_call.1} parent=27 // pred_check
          %p373 = pneg %p131
        $region42: #{tpu_custom_call.1} parent=27 // pred_check_branch
          %375 = sbr.rel (%p373) target = $region44
        $region43: #{tpu_custom_call.1} parent=27 // pred_region
          _
        $region44: #{tpu_custom_call.1} parent=27 // pred_fallthru
          _
      $region28: #{tpu_custom_call.1} parent=5 // pred_fallthru
        _
      %p376 = scmp.le.s32.totalorder 2, %s17
      // Predicated region
      $region45: #{tpu_custom_call.1} parent=5 // pred_check
        %p377 = pneg %p376
      $region46: #{tpu_custom_call.1} parent=5 // pred_check_branch
        %379 = sbr.rel (%p377) target = $region48
      $region47: #{tpu_custom_call.1} parent=5 // pred_region
        %s380 = ssub.s32 %s17, 2
        // Predicated region
        $region49: #{tpu_custom_call.1} parent=47 // pred_check
          %p381 = pneg %p109
        $region50: #{tpu_custom_call.1} parent=47 // pred_check_branch
          %383 = sbr.rel (%p381) target = $region52
        $region51: #{tpu_custom_call.1} parent=47 // pred_region
          %s384 = sand.u32 %s94, 1
          %s385 = scalar_lea.sflag [#allocation4], %s384
          %s386 = sand.u32 %s94, 1
          %s387 = smul.addr %s386, 8
          %s388 = scalar_lea.vmem [#allocation7], %s387
          %389 = dma.done %s385, 128
        $region52: #{tpu_custom_call.1} parent=47 // pred_fallthru
          _
        // Predicated region
        $region53: #{tpu_custom_call.1} parent=47 // pred_check
          %p390 = pneg %p137
        $region54: #{tpu_custom_call.1} parent=47 // pred_check_branch
          %392 = sbr.rel (%p390) target = $region56
        $region55: #{tpu_custom_call.1} parent=47 // pred_region
          %p393 = scmp.lt.s32.totalorder %s28, 1
          %s394 = scalar_select %p393, %s28, 1
          %p395 = scmp.lt.s32.totalorder %s29, 0
          %s396 = scalar_select %p395, %s29, 0
          %s397 = sadd.s32 %s396, %s394
          %s398 = smul.addr %s397, 8
          %s399 = scalar_lea.vmem %s3, %s398
        $region56: #{tpu_custom_call.1} parent=47 // pred_fallthru
          _
      $region48: #{tpu_custom_call.1} parent=5 // pred_fallthru
        _
    $region6: #{tpu_custom_call.1} parent=1 // loop_footer
      %s21 = sadd.s32 1, %s17
    $region7: #{tpu_custom_call.1} parent=1 // loop_footer_branch
      %16 = sbr.rel target = $region3
    $region8: #{tpu_custom_call.1} parent=1 // loop_exit
      _
    %400 = vsyncpa [#allocation3], 1
    %s401 = scalar_lea.sflag [#allocation3], 1
    %402 = vsyncpa %s401, 1
    %403 = vsyncpa [#allocation6], 1
    %404 = vsyncpa [#allocation4], 1
    %s405 = scalar_lea.sflag [#allocation4], 1
    %406 = vsyncpa %s405, 1

</llo_original>
